<compile_context>
chip_gen: v7x
topology: tpu7x:2x2x1
jax: 0.10.0
libtpu: 0.0.40
codegen_flags: <defaults>
</compile_context>

<pallas_src>
import jax
import jax.numpy as jnp
from jax.experimental import pallas as pl
from jax.experimental.pallas import tpu as pltpu


def _round_up(x, m):
    return ((x + m - 1) // m) * m


def _cdiv(a, b):
    return (a + b - 1) // b


# Lane-tile cap.  Double-buffered per-tile footprint at 16384 lanes is only a
# few MiB (x: 8*16384*2 B, out: 8*16384*4 B, plus ~1 MiB intermediates), far
# under the default scoped VMEM on v5e/v6e/v7x, so no vmem_limit override.
_MAX_TB = 16384


def _use_bf16_epilogue():
    """bf16 VPU/EUP exists on v6e (Trillium) and v7x; v5e/v4 need f32 epilogue."""
    try:
        kind = jax.devices()[0].device_kind.lower()
    except Exception:
        return False
    return any(tag in kind for tag in ("v6", "v7", "trillium"))


def _choose_tiles(batch):
    """Near-equal 128-aligned lane tiles.

    For batch >= 256 force >= 2 (even) tiles so both v7x TensorCores get batch
    tiles; the extra grid step is noise (~0.35us) on single-TC v5e/v6e.
    """
    n_tiles = max(1, _cdiv(batch, _MAX_TB))
    if batch >= 256:
        n_tiles = max(n_tiles, 2)
        n_tiles += n_tiles % 2          # even -> equal split across 2 TCs
    tb = _round_up(_cdiv(batch, n_tiles), 128)
    return n_tiles, tb


def _qnetwork_kernel(x_ref,
                     w1_ref, b1_ref, w2_ref, b2_ref, w3_ref, b3_ref,
                     w4_ref, b4_ref, w5_ref, b5_ref, w6_ref, b6_ref,
                     out_ref):
    """Fused QNetwork forward on one batch (lane) tile.

    Layout:
      x_ref       : [state_p, TB]  bf16   (batch in lanes)
      w{1..6}_ref : [out_p, in_p]  bf16   (torch-native [out, in], zero-padded)
      b{1..5}_ref : [out_p, 1]     bf16 on v6e/v7x, f32 on v5e (epilogue dtype)
      b6_ref      : [out_p, 1]     f32
      out_ref     : [act_p, TB]    f32
    """
    h = x_ref[...]                       # bf16 [state_p, TB]

    def hidden(h_bf16, w_ref, b_ref):
        # MXU matmul with f32 accumulation; bias-add + tanh in the packed
        # bias dtype (bf16 where the VPU/EUP support it, f32 on v5e), then
        # back to bf16 as the next layer's MXU input.
        z = jnp.dot(w_ref[...], h_bf16, preferred_element_type=jnp.float32)
        z = z.astype(b_ref.dtype) + b_ref[...]   # [out_p,1] broadcast over lanes
        return jnp.tanh(z).astype(jnp.bfloat16)

    h = hidden(h, w1_ref, b1_ref)
    h = hidden(h, w2_ref, b2_ref)
    h = hidden(h, w3_ref, b3_ref)
    h = hidden(h, w4_ref, b4_ref)
    h = hidden(h, w5_ref, b5_ref)

    # Final layer: no activation, f32 output.
    out_ref[...] = (jnp.dot(w6_ref[...], h, preferred_element_type=jnp.float32)
                    + b6_ref[...])


def _qnetwork_forward_impl(x, params):
    """x: [B, state_size] f32.  params: 6 tuples (W [out, in], b [out]) f32 in
    PyTorch nn.Linear layout.  Returns [B, action_size] f32."""
    B, state = x.shape
    action = params[-1][0].shape[0]
    epi_dtype = jnp.bfloat16 if _use_bf16_epilogue() else jnp.float32

    # Padded sizes: feature dims -> multiple of 8 (sublane); batch -> n_tiles
    # near-equal 128-aligned lane tiles (minimal padding, >=2 tiles for v7x).
    state_p = _round_up(state, 8)
    act_p = _round_up(action, 8)
    n_tiles, tb = _choose_tiles(B)
    b_p = n_tiles * tb
    grid = (n_tiles,)

    # ---- pack operands: batch in lane axis, bf16 MXU operands --------------
    # (Runs under the surrounding jit, so this pad/transpose fuses with the
    # producer instead of launching as a standalone relayout kernel.)
    x_p = jnp.zeros((state_p, b_p), jnp.bfloat16)
    x_p = x_p.at[:state, :B].set(x.T.astype(jnp.bfloat16))

    operands = [x_p]
    in_specs = [pl.BlockSpec((state_p, tb), lambda i: (0, i))]
    layer_dims = []
    for li, (w, b) in enumerate(params):
        out_f, in_f = w.shape
        out_fp, in_fp = _round_up(out_f, 8), _round_up(in_f, 8)
        w_pk = jnp.zeros((out_fp, in_fp), jnp.bfloat16)
        w_pk = w_pk.at[:out_f, :in_f].set(w.astype(jnp.bfloat16))
        b_dt = jnp.float32 if li == 5 else epi_dtype
        b_pk = jnp.zeros((out_fp, 1), b_dt)
        b_pk = b_pk.at[:out_f, 0].set(b.astype(b_dt))
        operands += [w_pk, b_pk]
        # Constant block index -> weights/biases stay VMEM-resident across the
        # whole grid (no per-tile re-DMA).
        in_specs.append(pl.BlockSpec((out_fp, in_fp), lambda i: (0, 0)))
        in_specs.append(pl.BlockSpec((out_fp, 1), lambda i: (0, 0)))
        layer_dims.append((in_fp, out_fp))

    out_shape = jax.ShapeDtypeStruct((act_p, b_p), jnp.float32)
    out_spec = pl.BlockSpec((act_p, tb), lambda i: (0, i))

    # Advisory cost estimate for XLA's scheduler around the custom call.
    flops = 2 * b_p * sum(i * o for i, o in layer_dims)
    transcendentals = b_p * sum(o for _, o in layer_dims[:5])
    bytes_accessed = (2 * state_p * b_p + 4 * act_p * b_p
                      + sum(2 * i * o + 4 * o for i, o in layer_dims))

    out_t = pl.pallas_call(
        _qnetwork_kernel,
        out_shape=out_shape,
        grid=grid,
        in_specs=in_specs,
        out_specs=out_spec,
        compiler_params=pltpu.CompilerParams(
            dimension_semantics=("parallel",)),      # megacore split on v7x
        cost_estimate=pl.CostEstimate(
            flops=flops,
            transcendentals=transcendentals,
            bytes_accessed=bytes_accessed),
    )(*operands)

    # Drop padding, return batch-major result (fuses with downstream consumer
    # under the surrounding jit).
    return out_t[:action, :B].T


qnetwork_forward = jax.jit(_qnetwork_forward_impl)


def init_qnetwork_params(key, state_size, action_size):
    """PyTorch-default-like init, torch layout: W [out, in], b [out]."""
    dims = [state_size, 30, 30, 30, 30, 30, action_size]
    params = []
    for i in range(6):
        fan_in, fan_out = dims[i], dims[i + 1]
        key, kw, kb = jax.random.split(key, 3)
        bound = 1.0 / (fan_in ** 0.5)
        w = jax.random.uniform(kw, (fan_out, fan_in), jnp.float32, -bound, bound)
        b = jax.random.uniform(kb, (fan_out,), jnp.float32, -bound, bound)
        params.append((w, b))
    return params


def qnetwork_reference_f32(x, params):
    """Plain-JAX f32 reference (PyTorch semantics)."""
    h = x
    for i, (w, b) in enumerate(params):
        h = h @ w.T + b
        if i < 5:
            h = jnp.tanh(h)
    return h


def qnetwork_reference_policy(x, params, bf16_epilogue):
    """Plain-JAX reference mirroring the kernel's dtype policy (bf16 MXU
    operands, f32 accumulation, epilogue in bf16 or f32 per chip)."""
    epi = jnp.bfloat16 if bf16_epilogue else jnp.float32
    h = x.astype(jnp.bfloat16)
    out = None
    for i, (w, b) in enumerate(params):
        z = jnp.dot(h, w.T.astype(jnp.bfloat16),
                    preferred_element_type=jnp.float32)
        if i < 5:
            z = z.astype(epi) + b.astype(epi)
            h = jnp.tanh(z).astype(jnp.bfloat16)
        else:
            out = z + b
    return out.astype(jnp.float32)


if __name__ == "__main__":
    state_size = 8
    action_size = 4
    batch = 2

    key = jax.random.PRNGKey(0)
    key, kx = jax.random.split(key)
    x = jax.random.normal(kx, (batch, state_size), jnp.float32)

    params = init_qnetwork_params(key, state_size, action_size)

    out = qnetwork_forward(x, params)
    out = jax.block_until_ready(out)
    assert out.shape == (batch, action_size)
    assert bool(jnp.all(jnp.isfinite(out)))

    # Dtype-policy check (same bf16 casts as the kernel) — informational,
    # moderately tight tolerance (MXU accumulation order may differ from XLA).
    ref_pol = qnetwork_reference_policy(x, params, _use_bf16_epilogue())
    assert jnp.allclose(out, ref_pol, atol=1e-2, rtol=1e-2)

    # Semantics check vs pure-f32 PyTorch-equivalent forward — loose tolerance
    # to cover bf16 quantization of weights/activations.
    ref_f32 = qnetwork_reference_f32(x, params)
    assert jnp.allclose(out, ref_f32, atol=5e-2, rtol=5e-2)

    print("KERNEL_OK")
</pallas_src>

<mosaic_0001>
module attributes {stable_mosaic.version = 11 : i64} {
  func.func @_qnetwork_kernel(%arg0: i32, %arg1: memref<8x128xbf16, #tpu.memory_space<vmem>>, %arg2: memref<32x8xbf16, #tpu.memory_space<vmem>>, %arg3: memref<32x1xf32, #tpu.memory_space<vmem>>, %arg4: memref<32x32xbf16, #tpu.memory_space<vmem>>, %arg5: memref<32x1xf32, #tpu.memory_space<vmem>>, %arg6: memref<32x32xbf16, #tpu.memory_space<vmem>>, %arg7: memref<32x1xf32, #tpu.memory_space<vmem>>, %arg8: memref<32x32xbf16, #tpu.memory_space<vmem>>, %arg9: memref<32x1xf32, #tpu.memory_space<vmem>>, %arg10: memref<32x32xbf16, #tpu.memory_space<vmem>>, %arg11: memref<32x1xf32, #tpu.memory_space<vmem>>, %arg12: memref<8x32xbf16, #tpu.memory_space<vmem>>, %arg13: memref<8x1xf32, #tpu.memory_space<vmem>>, %arg14: memref<8x128xf32, #tpu.memory_space<vmem>>) attributes {dimension_semantics = [#tpu.dimension_semantics<parallel>], iteration_bounds = array<i64: 1>, scalar_prefetch = 0 : i64, scratch_operands = 0 : i64, tpu.core_type = #tpu.core_type<tc>, window_params = [{transform_indices = @transform_0, window_bounds = array<i64: 8, 128>}, {pipeline_mode = #tpu.pipeline_mode<synchronous>, transform_indices = @transform_1, window_bounds = array<i64: 32, 8>}, {pipeline_mode = #tpu.pipeline_mode<synchronous>, transform_indices = @transform_2, window_bounds = array<i64: 32, 1>}, {pipeline_mode = #tpu.pipeline_mode<synchronous>, transform_indices = @transform_3, window_bounds = array<i64: 32, 32>}, {pipeline_mode = #tpu.pipeline_mode<synchronous>, transform_indices = @transform_4, window_bounds = array<i64: 32, 1>}, {pipeline_mode = #tpu.pipeline_mode<synchronous>, transform_indices = @transform_5, window_bounds = array<i64: 32, 32>}, {pipeline_mode = #tpu.pipeline_mode<synchronous>, transform_indices = @transform_6, window_bounds = array<i64: 32, 1>}, {pipeline_mode = #tpu.pipeline_mode<synchronous>, transform_indices = @transform_7, window_bounds = array<i64: 32, 32>}, {pipeline_mode = #tpu.pipeline_mode<synchronous>, transform_indices = @transform_8, window_bounds = array<i64: 32, 1>}, {pipeline_mode = #tpu.pipeline_mode<synchronous>, transform_indices = @transform_9, window_bounds = array<i64: 32, 32>}, {pipeline_mode = #tpu.pipeline_mode<synchronous>, transform_indices = @transform_10, window_bounds = array<i64: 32, 1>}, {pipeline_mode = #tpu.pipeline_mode<synchronous>, transform_indices = @transform_11, window_bounds = array<i64: 8, 32>}, {pipeline_mode = #tpu.pipeline_mode<synchronous>, transform_indices = @transform_12, window_bounds = array<i64: 8, 1>}, {transform_indices = @transform_13, window_bounds = array<i64: 8, 128>}]} {
    %c0 = arith.constant 0 : index
    %c0_0 = arith.constant 0 : index
    %0 = vector.load %arg1[%c0, %c0_0] : memref<8x128xbf16, #tpu.memory_space<vmem>>, vector<8x128xbf16>
    %c0_1 = arith.constant 0 : index
    %c0_2 = arith.constant 0 : index
    %1 = vector.load %arg2[%c0_1, %c0_2] : memref<32x8xbf16, #tpu.memory_space<vmem>>, vector<32x8xbf16>
    %cst = arith.constant dense<0.000000e+00> : vector<32x128xf32>
    %2 = tpu.matmul %1, %0, %cst {dimension_numbers = #tpu.dot_dimension_numbers<[1], [0], [0], [1], [0, 0, 1, 1], [], []>} : vector<32x8xbf16>, vector<8x128xbf16>, vector<32x128xf32> -> vector<32x128xf32>
    %c0_3 = arith.constant 0 : index
    %c0_4 = arith.constant 0 : index
    %3 = vector.load %arg3[%c0_3, %c0_4] : memref<32x1xf32, #tpu.memory_space<vmem>>, vector<32x1xf32>
    %4 = vector.broadcast %3 : vector<32x1xf32> to vector<32x128xf32>
    %5 = arith.addf %2, %4 : vector<32x128xf32>
    %6 = math.tanh %5 : vector<32x128xf32>
    %7 = arith.truncf %6 : vector<32x128xf32> to vector<32x128xbf16>
    %c0_5 = arith.constant 0 : index
    %c0_6 = arith.constant 0 : index
    %8 = vector.load %arg4[%c0_5, %c0_6] : memref<32x32xbf16, #tpu.memory_space<vmem>>, vector<32x32xbf16>
    %cst_7 = arith.constant dense<0.000000e+00> : vector<32x128xf32>
    %9 = tpu.matmul %8, %7, %cst_7 {dimension_numbers = #tpu.dot_dimension_numbers<[1], [0], [0], [1], [0, 0, 1, 1], [], []>} : vector<32x32xbf16>, vector<32x128xbf16>, vector<32x128xf32> -> vector<32x128xf32>
    %c0_8 = arith.constant 0 : index
    %c0_9 = arith.constant 0 : index
    %10 = vector.load %arg5[%c0_8, %c0_9] : memref<32x1xf32, #tpu.memory_space<vmem>>, vector<32x1xf32>
    %11 = vector.broadcast %10 : vector<32x1xf32> to vector<32x128xf32>
    %12 = arith.addf %9, %11 : vector<32x128xf32>
    %13 = math.tanh %12 : vector<32x128xf32>
    %14 = arith.truncf %13 : vector<32x128xf32> to vector<32x128xbf16>
    %c0_10 = arith.constant 0 : index
    %c0_11 = arith.constant 0 : index
    %15 = vector.load %arg6[%c0_10, %c0_11] : memref<32x32xbf16, #tpu.memory_space<vmem>>, vector<32x32xbf16>
    %cst_12 = arith.constant dense<0.000000e+00> : vector<32x128xf32>
    %16 = tpu.matmul %15, %14, %cst_12 {dimension_numbers = #tpu.dot_dimension_numbers<[1], [0], [0], [1], [0, 0, 1, 1], [], []>} : vector<32x32xbf16>, vector<32x128xbf16>, vector<32x128xf32> -> vector<32x128xf32>
    %c0_13 = arith.constant 0 : index
    %c0_14 = arith.constant 0 : index
    %17 = vector.load %arg7[%c0_13, %c0_14] : memref<32x1xf32, #tpu.memory_space<vmem>>, vector<32x1xf32>
    %18 = vector.broadcast %17 : vector<32x1xf32> to vector<32x128xf32>
    %19 = arith.addf %16, %18 : vector<32x128xf32>
    %20 = math.tanh %19 : vector<32x128xf32>
    %21 = arith.truncf %20 : vector<32x128xf32> to vector<32x128xbf16>
    %c0_15 = arith.constant 0 : index
    %c0_16 = arith.constant 0 : index
    %22 = vector.load %arg8[%c0_15, %c0_16] : memref<32x32xbf16, #tpu.memory_space<vmem>>, vector<32x32xbf16>
    %cst_17 = arith.constant dense<0.000000e+00> : vector<32x128xf32>
    %23 = tpu.matmul %22, %21, %cst_17 {dimension_numbers = #tpu.dot_dimension_numbers<[1], [0], [0], [1], [0, 0, 1, 1], [], []>} : vector<32x32xbf16>, vector<32x128xbf16>, vector<32x128xf32> -> vector<32x128xf32>
    %c0_18 = arith.constant 0 : index
    %c0_19 = arith.constant 0 : index
    %24 = vector.load %arg9[%c0_18, %c0_19] : memref<32x1xf32, #tpu.memory_space<vmem>>, vector<32x1xf32>
    %25 = vector.broadcast %24 : vector<32x1xf32> to vector<32x128xf32>
    %26 = arith.addf %23, %25 : vector<32x128xf32>
    %27 = math.tanh %26 : vector<32x128xf32>
    %28 = arith.truncf %27 : vector<32x128xf32> to vector<32x128xbf16>
    %c0_20 = arith.constant 0 : index
    %c0_21 = arith.constant 0 : index
    %29 = vector.load %arg10[%c0_20, %c0_21] : memref<32x32xbf16, #tpu.memory_space<vmem>>, vector<32x32xbf16>
    %cst_22 = arith.constant dense<0.000000e+00> : vector<32x128xf32>
    %30 = tpu.matmul %29, %28, %cst_22 {dimension_numbers = #tpu.dot_dimension_numbers<[1], [0], [0], [1], [0, 0, 1, 1], [], []>} : vector<32x32xbf16>, vector<32x128xbf16>, vector<32x128xf32> -> vector<32x128xf32>
    %c0_23 = arith.constant 0 : index
    %c0_24 = arith.constant 0 : index
    %31 = vector.load %arg11[%c0_23, %c0_24] : memref<32x1xf32, #tpu.memory_space<vmem>>, vector<32x1xf32>
    %32 = vector.broadcast %31 : vector<32x1xf32> to vector<32x128xf32>
    %33 = arith.addf %30, %32 : vector<32x128xf32>
    %34 = math.tanh %33 : vector<32x128xf32>
    %35 = arith.truncf %34 : vector<32x128xf32> to vector<32x128xbf16>
    %c0_25 = arith.constant 0 : index
    %c0_26 = arith.constant 0 : index
    %36 = vector.load %arg12[%c0_25, %c0_26] : memref<8x32xbf16, #tpu.memory_space<vmem>>, vector<8x32xbf16>
    %cst_27 = arith.constant dense<0.000000e+00> : vector<8x128xf32>
    %37 = tpu.matmul %36, %35, %cst_27 {dimension_numbers = #tpu.dot_dimension_numbers<[1], [0], [0], [1], [0, 0, 1, 1], [], []>} : vector<8x32xbf16>, vector<32x128xbf16>, vector<8x128xf32> -> vector<8x128xf32>
    %c0_28 = arith.constant 0 : index
    %c0_29 = arith.constant 0 : index
    %38 = vector.load %arg13[%c0_28, %c0_29] : memref<8x1xf32, #tpu.memory_space<vmem>>, vector<8x1xf32>
    %39 = vector.broadcast %38 : vector<8x1xf32> to vector<8x128xf32>
    %40 = arith.addf %37, %39 : vector<8x128xf32>
    %c0_30 = arith.constant 0 : index
    %c0_31 = arith.constant 0 : index
    %41 = vector.load %arg14[%c0_30, %c0_31] : memref<8x128xf32, #tpu.memory_space<vmem>>, vector<8x128xf32>
    tpu.vector_store %arg14[%c0_30, %c0_31], %40 {strides = array<i32>} : memref<8x128xf32, #tpu.memory_space<vmem>>, vector<8x128xf32>,
    return
  }
  func.func @transform_0(%arg0: i32) -> (i32, i32) {
    %c0_i32 = arith.constant 0 : i32
    %c0_i32_0 = arith.constant 0 : i32
    return %c0_i32, %arg0 : i32, i32
  }
  func.func @transform_1(%arg0: i32) -> (i32, i32) {
    %c0_i32 = arith.constant 0 : i32
    %c0_i32_0 = arith.constant 0 : i32
    %c0_i32_1 = arith.constant 0 : i32
    return %c0_i32, %c0_i32_0 : i32, i32
  }
  func.func @transform_2(%arg0: i32) -> (i32, i32) {
    %c0_i32 = arith.constant 0 : i32
    %c0_i32_0 = arith.constant 0 : i32
    %c0_i32_1 = arith.constant 0 : i32
    return %c0_i32, %c0_i32_0 : i32, i32
  }
  func.func @transform_3(%arg0: i32) -> (i32, i32) {
    %c0_i32 = arith.constant 0 : i32
    %c0_i32_0 = arith.constant 0 : i32
    %c0_i32_1 = arith.constant 0 : i32
    return %c0_i32, %c0_i32_0 : i32, i32
  }
  func.func @transform_4(%arg0: i32) -> (i32, i32) {
    %c0_i32 = arith.constant 0 : i32
    %c0_i32_0 = arith.constant 0 : i32
    %c0_i32_1 = arith.constant 0 : i32
    return %c0_i32, %c0_i32_0 : i32, i32
  }
  func.func @transform_5(%arg0: i32) -> (i32, i32) {
    %c0_i32 = arith.constant 0 : i32
    %c0_i32_0 = arith.constant 0 : i32
    %c0_i32_1 = arith.constant 0 : i32
    return %c0_i32, %c0_i32_0 : i32, i32
  }
  func.func @transform_6(%arg0: i32) -> (i32, i32) {
    %c0_i32 = arith.constant 0 : i32
    %c0_i32_0 = arith.constant 0 : i32
    %c0_i32_1 = arith.constant 0 : i32
    return %c0_i32, %c0_i32_0 : i32, i32
  }
  func.func @transform_7(%arg0: i32) -> (i32, i32) {
    %c0_i32 = arith.constant 0 : i32
    %c0_i32_0 = arith.constant 0 : i32
    %c0_i32_1 = arith.constant 0 : i32
    return %c0_i32, %c0_i32_0 : i32, i32
  }
  func.func @transform_8(%arg0: i32) -> (i32, i32) {
    %c0_i32 = arith.constant 0 : i32
    %c0_i32_0 = arith.constant 0 : i32
    %c0_i32_1 = arith.constant 0 : i32
    return %c0_i32, %c0_i32_0 : i32, i32
  }
  func.func @transform_9(%arg0: i32) -> (i32, i32) {
    %c0_i32 = arith.constant 0 : i32
    %c0_i32_0 = arith.constant 0 : i32
    %c0_i32_1 = arith.constant 0 : i32
    return %c0_i32, %c0_i32_0 : i32, i32
  }
  func.func @transform_10(%arg0: i32) -> (i32, i32) {
    %c0_i32 = arith.constant 0 : i32
    %c0_i32_0 = arith.constant 0 : i32
    %c0_i32_1 = arith.constant 0 : i32
    return %c0_i32, %c0_i32_0 : i32, i32
  }
  func.func @transform_11(%arg0: i32) -> (i32, i32) {
    %c0_i32 = arith.constant 0 : i32
    %c0_i32_0 = arith.constant 0 : i32
    %c0_i32_1 = arith.constant 0 : i32
    return %c0_i32, %c0_i32_0 : i32, i32
  }
  func.func @transform_12(%arg0: i32) -> (i32, i32) {
    %c0_i32 = arith.constant 0 : i32
    %c0_i32_0 = arith.constant 0 : i32
    %c0_i32_1 = arith.constant 0 : i32
    return %c0_i32, %c0_i32_0 : i32, i32
  }
  func.func @transform_13(%arg0: i32) -> (i32, i32) {
    %c0_i32 = arith.constant 0 : i32
    %c0_i32_0 = arith.constant 0 : i32
    return %c0_i32, %arg0 : i32, i32
  }
}

</mosaic_0001>

<llo_original>
// kernel: _qnetwork_forward_impl.1
$region0: #{_qnetwork_forward_impl.1}
  #allocation0 [shape = 'u32[]', space=smem, size = 0x4, offset = 0x4, fixed_abs, tag = 'smem constant byte address 0x4 - core index']
  #allocation1 [shape = 'u32[144,128]{1,0:T(1,128)}', space=vmem, size = 0x12000, scoped, tag = 'internal scratch']
  %s0 = inlined_call_operand.vmem [shape: bf16[8,128], index: 0, kind: input, shape index: {}]
  %s1 = inlined_call_operand.vmem [shape: bf16[32,8], index: 1, kind: input, shape index: {}]
  %s2 = inlined_call_operand.vmem [shape: f32[32,1], index: 2, kind: input, shape index: {}]
  %s3 = inlined_call_operand.vmem [shape: bf16[32,32], index: 3, kind: input, shape index: {}]
  %s4 = inlined_call_operand.vmem [shape: f32[32,1], index: 4, kind: input, shape index: {}]
  %s5 = inlined_call_operand.vmem [shape: bf16[32,32], index: 5, kind: input, shape index: {}]
  %s6 = inlined_call_operand.vmem [shape: f32[32,1], index: 6, kind: input, shape index: {}]
  %s7 = inlined_call_operand.vmem [shape: bf16[32,32], index: 7, kind: input, shape index: {}]
  %s8 = inlined_call_operand.vmem [shape: f32[32,1], index: 8, kind: input, shape index: {}]
  %s9 = inlined_call_operand.vmem [shape: bf16[32,32], index: 9, kind: input, shape index: {}]
  %s10 = inlined_call_operand.vmem [shape: f32[32,1], index: 10, kind: input, shape index: {}]
  %s11 = inlined_call_operand.vmem [shape: bf16[8,32], index: 11, kind: input, shape index: {}]
  %s12 = inlined_call_operand.vmem [shape: f32[8,1], index: 12, kind: input, shape index: {}]
  %s13 = inlined_call_operand.vmem [shape: f32[8,128], index: 13, kind: output, shape index: {}]
  %s14 = sld [smem:[#allocation0]]
  $region62: #{_qnetwork_forward_impl.1} parent=0
    _
  %s16 = ssub.s32 1, %s14
  %s17 = scalar_select 0, %s16, %s14
  // Predicated region
  $region2: #{_qnetwork_forward_impl.1} parent=0 // pred_check
    _
  $region3: #{_qnetwork_forward_impl.1} parent=0 // pred_check_branch
    %19 = sbr.rel (0) target = $region5
  $region4: #{_qnetwork_forward_impl.1} parent=0 // pred_region
    _
  $region5: #{_qnetwork_forward_impl.1} parent=0 // pred_fallthru
    _
  // Predicated region
  $region6: #{_qnetwork_forward_impl.1} parent=0 // pred_check
    _
  $region7: #{_qnetwork_forward_impl.1} parent=0 // pred_check_branch
    %21 = sbr.rel (0) target = $region9
  $region8: #{_qnetwork_forward_impl.1} parent=0 // pred_region
    _
  $region9: #{_qnetwork_forward_impl.1} parent=0 // pred_fallthru
    _
  // Predicated region
  $region10: #{_qnetwork_forward_impl.1} parent=0 // pred_check
    _
  $region11: #{_qnetwork_forward_impl.1} parent=0 // pred_check_branch
    %23 = sbr.rel (0) target = $region13
  $region12: #{_qnetwork_forward_impl.1} parent=0 // pred_region
    _
  $region13: #{_qnetwork_forward_impl.1} parent=0 // pred_fallthru
    _
  // Predicated region
  $region14: #{_qnetwork_forward_impl.1} parent=0 // pred_check
    _
  $region15: #{_qnetwork_forward_impl.1} parent=0 // pred_check_branch
    %25 = sbr.rel (0) target = $region17
  $region16: #{_qnetwork_forward_impl.1} parent=0 // pred_region
    _
  $region17: #{_qnetwork_forward_impl.1} parent=0 // pred_fallthru
    _
  // Predicated region
  $region18: #{_qnetwork_forward_impl.1} parent=0 // pred_check
    _
  $region19: #{_qnetwork_forward_impl.1} parent=0 // pred_check_branch
    %27 = sbr.rel (0) target = $region21
  $region20: #{_qnetwork_forward_impl.1} parent=0 // pred_region
    _
  $region21: #{_qnetwork_forward_impl.1} parent=0 // pred_fallthru
    _
  // Predicated region
  $region22: #{_qnetwork_forward_impl.1} parent=0 // pred_check
    _
  $region23: #{_qnetwork_forward_impl.1} parent=0 // pred_check_branch
    %29 = sbr.rel (0) target = $region25
  $region24: #{_qnetwork_forward_impl.1} parent=0 // pred_region
    _
  $region25: #{_qnetwork_forward_impl.1} parent=0 // pred_fallthru
    _
  // Predicated region
  $region26: #{_qnetwork_forward_impl.1} parent=0 // pred_check
    _
  $region27: #{_qnetwork_forward_impl.1} parent=0 // pred_check_branch
    %31 = sbr.rel (0) target = $region29
  $region28: #{_qnetwork_forward_impl.1} parent=0 // pred_region
    _
  $region29: #{_qnetwork_forward_impl.1} parent=0 // pred_fallthru
    _
  // Predicated region
  $region30: #{_qnetwork_forward_impl.1} parent=0 // pred_check
    _
  $region31: #{_qnetwork_forward_impl.1} parent=0 // pred_check_branch
    %33 = sbr.rel (0) target = $region33
  $region32: #{_qnetwork_forward_impl.1} parent=0 // pred_region
    _
  $region33: #{_qnetwork_forward_impl.1} parent=0 // pred_fallthru
    _
  // Predicated region
  $region34: #{_qnetwork_forward_impl.1} parent=0 // pred_check
    _
  $region35: #{_qnetwork_forward_impl.1} parent=0 // pred_check_branch
    %35 = sbr.rel (0) target = $region37
  $region36: #{_qnetwork_forward_impl.1} parent=0 // pred_region
    _
  $region37: #{_qnetwork_forward_impl.1} parent=0 // pred_fallthru
    _
  // Predicated region
  $region38: #{_qnetwork_forward_impl.1} parent=0 // pred_check
    _
  $region39: #{_qnetwork_forward_impl.1} parent=0 // pred_check_branch
    %37 = sbr.rel (0) target = $region41
  $region40: #{_qnetwork_forward_impl.1} parent=0 // pred_region
    _
  $region41: #{_qnetwork_forward_impl.1} parent=0 // pred_fallthru
    _
  // Predicated region
  $region42: #{_qnetwork_forward_impl.1} parent=0 // pred_check
    _
  $region43: #{_qnetwork_forward_impl.1} parent=0 // pred_check_branch
    %39 = sbr.rel (0) target = $region45
  $region44: #{_qnetwork_forward_impl.1} parent=0 // pred_region
    _
  $region45: #{_qnetwork_forward_impl.1} parent=0 // pred_fallthru
    _
  // Predicated region
  $region46: #{_qnetwork_forward_impl.1} parent=0 // pred_check
    _
  $region47: #{_qnetwork_forward_impl.1} parent=0 // pred_check_branch
    %41 = sbr.rel (0) target = $region49
  $region48: #{_qnetwork_forward_impl.1} parent=0 // pred_region
    _
  $region49: #{_qnetwork_forward_impl.1} parent=0 // pred_fallthru
    _
  // Predicated region
  $region50: #{_qnetwork_forward_impl.1} parent=0 // pred_check
    _
  $region51: #{_qnetwork_forward_impl.1} parent=0 // pred_check_branch
    %43 = sbr.rel (0) target = $region53
  $region52: #{_qnetwork_forward_impl.1} parent=0 // pred_region
    _
  $region53: #{_qnetwork_forward_impl.1} parent=0 // pred_fallthru
    _
  %v45 = vld [vmem:[%s0] sm:$0xf]
  %v46 = vld [vmem:[%s1] sm:$0xf]
  %v47 = vld [vmem:[%s1 + $0x4] sm:$0xf]
  %v48 = vld [vmem:[%s1 + $0x8] sm:$0xf]
  %v49 = vld [vmem:[%s1 + $0xc] sm:$0xf]
  %v50 = vld [vmem:[%s2] sm:$0xff]
  %v51 = vld [vmem:[%s2 + $0x8] sm:$0xff]
  %v52 = vld [vmem:[%s2 + $0x10] sm:$0xff]
  %v53 = vld [vmem:[%s2 + $0x18] sm:$0xff]
  %55 = vset.pattern.permute.xlu0 0
  %56 = vperm.xlu0 %55, %v50
  %v57 = vpop.permute.xlu0 %56
  %60 = vset.pattern.permute.xlu0 0
  %61 = vperm.xlu0 %60, %v51
  %v62 = vpop.permute.xlu0 %61
  %65 = vset.pattern.permute.xlu0 0
  %66 = vperm.xlu0 %65, %v52
  %v67 = vpop.permute.xlu0 %66
  %70 = vset.pattern.permute.xlu0 0
  %71 = vperm.xlu0 %70, %v53
  %v72 = vpop.permute.xlu0 %71
  %v78 = vunpack.c.l.b16 %v46
  %v79 = vunpack.c.l.b16 %v47
  %v80 = vunpack.c.l.b16 %v48
  %v81 = vunpack.c.l.b16 %v49
  %v82 = vpack.c.b16 %v79, %v78
  %v83 = vpack.c.b16 %v81, %v80
  %vm84 = vcmask 64512
  %v86 = vsel %vm84, %v82, 0
  %v89 = vsel %vm84, %v83, 0
  %vm91 = vcmask 1043456
  %v93 = vsel %vm91, %v45, 0
  %95 = vmatprep.subr.bf16.mxu0 0
  %96 = vmatpush1.bf16.msra.mxu0 %v93
  %97 = vmatprep.subr.bf16.mxu0 0
  %98 = vmatpush1.bf16.msra.mxu0 0
  %99 = vmatprep.subr.bf16.mxu0 0
  %100 = vmatpush1.bf16.msra.mxu0 0
  %101 = vmatprep.subr.bf16.mxu0 0
  %102 = vmatpush1.bf16.msra.mxu0 0
  %103 = vmatprep.subr.bf16.mxu0 0
  %104 = vmatpush1.bf16.msra.mxu0 0
  %105 = vmatprep.subr.bf16.mxu0 0
  %106 = vmatpush1.bf16.msra.mxu0 0
  %107 = vmatprep.subr.bf16.mxu0 0
  %108 = vmatpush1.bf16.msra.mxu0 0
  %109 = vmatprep.subr.bf16.mxu0 0
  %110 = vmatpush1.bf16.msra.mxu0 0
  %111 = vmatprep.subr.bf16.mxu0 0
  %112 = vmatpush1.bf16.msra.mxu0 0
  %113 = vmatprep.subr.bf16.mxu0 0
  %114 = vmatpush1.bf16.msra.mxu0 0
  %115 = vmatprep.subr.bf16.mxu0 0
  %116 = vmatpush1.bf16.msra.mxu0 0
  %117 = vmatprep.subr.bf16.mxu0 0
  %118 = vmatpush1.bf16.msra.mxu0 0
  %119 = vmatprep.subr.bf16.mxu0 0
  %120 = vmatpush1.bf16.msra.mxu0 0
  %121 = vmatprep.subr.bf16.mxu0 0
  %122 = vmatpush1.bf16.msra.mxu0 0
  %123 = vmatprep.subr.bf16.mxu0 0
  %124 = vmatpush1.bf16.msra.mxu0 0
  %125 = vmatprep.subr.bf16.mxu0 0
  %126 = vmatpush1.bf16.msra.mxu0 0
  %127 = vmatprep.mubr.bf16.mxu0 0
  %128 = vmatmul.mubr.bf16.gmra.mrb[0].mxu0 %v86
  %v129 = vpop.f32.mrb[0].mxu0
  %v130 = vadd.f32 %v57, %v129
  %v131 = vpop.f32.mrb[0].mxu0
  %v132 = vpop.f32.mrb[0].mxu0
  %v133 = vadd.f32 %v62, %v132
  %v134 = vpop.f32.mrb[0].mxu0
  %135 = vmatprep.mubr.bf16.mxu0 0
  %136 = vmatmul.mubr.bf16.gmra.mrb[0].mxu0 %v89
  %v137 = vpop.f32.mrb[0].mxu0
  %v138 = vadd.f32 %v67, %v137
  %v139 = vpop.f32.mrb[0].mxu0
  %v140 = vpop.f32.mrb[0].mxu0
  %v141 = vadd.f32 %v72, %v140
  %v142 = vpop.f32.mrb[0].mxu0
  %143 = vdwg.mxu0
  %v144 = vtanh.pop %v130
  %v145 = vtanh.pop %v133
  %v146 = vtanh.pop %v138
  %v147 = vtanh.pop %v141
  %v148 = vpack.c.bf16 %v145, %v144
  %v149 = vpack.c.bf16 %v147, %v146
  %v150 = vld [vmem:[%s3] sm:$0xf]
  %v151 = vld [vmem:[%s3 + $0x4] sm:$0xf]
  %v152 = vld [vmem:[%s3 + $0x8] sm:$0xf]
  %v153 = vld [vmem:[%s3 + $0xc] sm:$0xf]
  %v154 = vld [vmem:[%s4] sm:$0xff]
  %v155 = vld [vmem:[%s4 + $0x8] sm:$0xff]
  %v156 = vld [vmem:[%s4 + $0x10] sm:$0xff]
  %v157 = vld [vmem:[%s4 + $0x18] sm:$0xff]
  %159 = vset.pattern.permute.xlu0 0
  %160 = vperm.xlu0 %159, %v154
  %v161 = vpop.permute.xlu0 %160
  %164 = vset.pattern.permute.xlu0 0
  %165 = vperm.xlu0 %164, %v155
  %v166 = vpop.permute.xlu0 %165
  %169 = vset.pattern.permute.xlu0 0
  %170 = vperm.xlu0 %169, %v156
  %v171 = vpop.permute.xlu0 %170
  %174 = vset.pattern.permute.xlu0 0
  %175 = vperm.xlu0 %174, %v157
  %v176 = vpop.permute.xlu0 %175
  %v182 = vunpack.c.l.b16 %v150
  %v183 = vunpack.c.l.b16 %v151
  %v184 = vunpack.c.l.b16 %v152
  %v185 = vunpack.c.l.b16 %v153
  %v186 = vpack.c.b16 %v183, %v182
  %v187 = vpack.c.b16 %v185, %v184
  %vm188 = vcmask 261120
  %v190 = vsel %vm188, %v186, 0
  %v193 = vsel %vm188, %v187, 0
  %195 = vmatprep.subr.bf16.mxu0 0
  %196 = vmatpush1.bf16.msra.mxu0 %v148
  %197 = vmatprep.subr.bf16.mxu0 0
  %198 = vmatpush1.bf16.msra.mxu0 %v149
  %199 = vmatprep.subr.bf16.mxu0 0
  %200 = vmatpush1.bf16.msra.mxu0 0
  %201 = vmatprep.subr.bf16.mxu0 0
  %202 = vmatpush1.bf16.msra.mxu0 0
  %203 = vmatprep.subr.bf16.mxu0 0
  %204 = vmatpush1.bf16.msra.mxu0 0
  %205 = vmatprep.subr.bf16.mxu0 0
  %206 = vmatpush1.bf16.msra.mxu0 0
  %207 = vmatprep.subr.bf16.mxu0 0
  %208 = vmatpush1.bf16.msra.mxu0 0
  %209 = vmatprep.subr.bf16.mxu0 0
  %210 = vmatpush1.bf16.msra.mxu0 0
  %211 = vmatprep.subr.bf16.mxu0 0
  %212 = vmatpush1.bf16.msra.mxu0 0
  %213 = vmatprep.subr.bf16.mxu0 0
  %214 = vmatpush1.bf16.msra.mxu0 0
  %215 = vmatprep.subr.bf16.mxu0 0
  %216 = vmatpush1.bf16.msra.mxu0 0
  %217 = vmatprep.subr.bf16.mxu0 0
  %218 = vmatpush1.bf16.msra.mxu0 0
  %219 = vmatprep.subr.bf16.mxu0 0
  %220 = vmatpush1.bf16.msra.mxu0 0
  %221 = vmatprep.subr.bf16.mxu0 0
  %222 = vmatpush1.bf16.msra.mxu0 0
  %223 = vmatprep.subr.bf16.mxu0 0
  %224 = vmatpush1.bf16.msra.mxu0 0
  %225 = vmatprep.subr.bf16.mxu0 0
  %226 = vmatpush1.bf16.msra.mxu0 0
  %227 = vmatprep.mubr.bf16.mxu0 0
  %228 = vmatmul.mubr.bf16.gmra.mrb[0].mxu0 %v190
  %v229 = vpop.f32.mrb[0].mxu0
  %v230 = vadd.f32 %v161, %v229
  %v231 = vpop.f32.mrb[0].mxu0
  %v232 = vpop.f32.mrb[0].mxu0
  %v233 = vadd.f32 %v166, %v232
  %v234 = vpop.f32.mrb[0].mxu0
  %235 = vmatprep.mubr.bf16.mxu0 0
  %236 = vmatmul.mubr.bf16.gmra.mrb[0].mxu0 %v193
  %v237 = vpop.f32.mrb[0].mxu0
  %v238 = vadd.f32 %v171, %v237
  %v239 = vpop.f32.mrb[0].mxu0
  %v240 = vpop.f32.mrb[0].mxu0
  %v241 = vadd.f32 %v176, %v240
  %v242 = vpop.f32.mrb[0].mxu0
  %243 = vdwg.mxu0
  %v244 = vtanh.pop %v230
  %v245 = vtanh.pop %v233
  %v246 = vtanh.pop %v238
  %v247 = vtanh.pop %v241
  %v248 = vpack.c.bf16 %v245, %v244
  %v249 = vpack.c.bf16 %v247, %v246
  %v250 = vld [vmem:[%s5] sm:$0xf]
  %v251 = vld [vmem:[%s5 + $0x4] sm:$0xf]
  %v252 = vld [vmem:[%s5 + $0x8] sm:$0xf]
  %v253 = vld [vmem:[%s5 + $0xc] sm:$0xf]
  %v254 = vld [vmem:[%s6] sm:$0xff]
  %v255 = vld [vmem:[%s6 + $0x8] sm:$0xff]
  %v256 = vld [vmem:[%s6 + $0x10] sm:$0xff]
  %v257 = vld [vmem:[%s6 + $0x18] sm:$0xff]
  %259 = vset.pattern.permute.xlu0 0
  %260 = vperm.xlu0 %259, %v254
  %v261 = vpop.permute.xlu0 %260
  %264 = vset.pattern.permute.xlu0 0
  %265 = vperm.xlu0 %264, %v255
  %v266 = vpop.permute.xlu0 %265
  %269 = vset.pattern.permute.xlu0 0
  %270 = vperm.xlu0 %269, %v256
  %v271 = vpop.permute.xlu0 %270
  %274 = vset.pattern.permute.xlu0 0
  %275 = vperm.xlu0 %274, %v257
  %v276 = vpop.permute.xlu0 %275
  %v282 = vunpack.c.l.b16 %v250
  %v283 = vunpack.c.l.b16 %v251
  %v284 = vunpack.c.l.b16 %v252
  %v285 = vunpack.c.l.b16 %v253
  %v286 = vpack.c.b16 %v283, %v282
  %v287 = vpack.c.b16 %v285, %v284
  %v289 = vsel %vm188, %v286, 0
  %v292 = vsel %vm188, %v287, 0
  %294 = vmatprep.subr.bf16.mxu0 0
  %295 = vmatpush1.bf16.msra.mxu0 %v248
  %296 = vmatprep.subr.bf16.mxu0 0
  %297 = vmatpush1.bf16.msra.mxu0 %v249
  %298 = vmatprep.subr.bf16.mxu0 0
  %299 = vmatpush1.bf16.msra.mxu0 0
  %300 = vmatprep.subr.bf16.mxu0 0
  %301 = vmatpush1.bf16.msra.mxu0 0
  %302 = vmatprep.subr.bf16.mxu0 0
  %303 = vmatpush1.bf16.msra.mxu0 0
  %304 = vmatprep.subr.bf16.mxu0 0
  %305 = vmatpush1.bf16.msra.mxu0 0
  %306 = vmatprep.subr.bf16.mxu0 0
  %307 = vmatpush1.bf16.msra.mxu0 0
  %308 = vmatprep.subr.bf16.mxu0 0
  %309 = vmatpush1.bf16.msra.mxu0 0
  %310 = vmatprep.subr.bf16.mxu0 0
  %311 = vmatpush1.bf16.msra.mxu0 0
  %312 = vmatprep.subr.bf16.mxu0 0
  %313 = vmatpush1.bf16.msra.mxu0 0
  %314 = vmatprep.subr.bf16.mxu0 0
  %315 = vmatpush1.bf16.msra.mxu0 0
  %316 = vmatprep.subr.bf16.mxu0 0
  %317 = vmatpush1.bf16.msra.mxu0 0
  %318 = vmatprep.subr.bf16.mxu0 0
  %319 = vmatpush1.bf16.msra.mxu0 0
  %320 = vmatprep.subr.bf16.mxu0 0
  %321 = vmatpush1.bf16.msra.mxu0 0
  %322 = vmatprep.subr.bf16.mxu0 0
  %323 = vmatpush1.bf16.msra.mxu0 0
  %324 = vmatprep.subr.bf16.mxu0 0
  %325 = vmatpush1.bf16.msra.mxu0 0
  %326 = vmatprep.mubr.bf16.mxu0 0
  %327 = vmatmul.mubr.bf16.gmra.mrb[0].mxu0 %v289
  %v328 = vpop.f32.mrb[0].mxu0
  %v329 = vadd.f32 %v261, %v328
  %v330 = vpop.f32.mrb[0].mxu0
  %v331 = vpop.f32.mrb[0].mxu0
  %v332 = vadd.f32 %v266, %v331
  %v333 = vpop.f32.mrb[0].mxu0
  %334 = vmatprep.mubr.bf16.mxu0 0
  %335 = vmatmul.mubr.bf16.gmra.mrb[0].mxu0 %v292
  %v336 = vpop.f32.mrb[0].mxu0
  %v337 = vadd.f32 %v271, %v336
  %v338 = vpop.f32.mrb[0].mxu0
  %v339 = vpop.f32.mrb[0].mxu0
  %v340 = vadd.f32 %v276, %v339
  %v341 = vpop.f32.mrb[0].mxu0
  %342 = vdwg.mxu0
  %v343 = vtanh.pop %v329
  %v344 = vtanh.pop %v332
  %v345 = vtanh.pop %v337
  %v346 = vtanh.pop %v340
  %v347 = vpack.c.bf16 %v344, %v343
  %v348 = vpack.c.bf16 %v346, %v345
  %v349 = vld [vmem:[%s7] sm:$0xf]
  %v350 = vld [vmem:[%s7 + $0x4] sm:$0xf]
  %v351 = vld [vmem:[%s7 + $0x8] sm:$0xf]
  %v352 = vld [vmem:[%s7 + $0xc] sm:$0xf]
  %v353 = vld [vmem:[%s8] sm:$0xff]
  %v354 = vld [vmem:[%s8 + $0x8] sm:$0xff]
  %v355 = vld [vmem:[%s8 + $0x10] sm:$0xff]
  %v356 = vld [vmem:[%s8 + $0x18] sm:$0xff]
  %358 = vset.pattern.permute.xlu0 0
  %359 = vperm.xlu0 %358, %v353
  %v360 = vpop.permute.xlu0 %359
  %363 = vset.pattern.permute.xlu0 0
  %364 = vperm.xlu0 %363, %v354
  %v365 = vpop.permute.xlu0 %364
  %368 = vset.pattern.permute.xlu0 0
  %369 = vperm.xlu0 %368, %v355
  %v370 = vpop.permute.xlu0 %369
  %373 = vset.pattern.permute.xlu0 0
  %374 = vperm.xlu0 %373, %v356
  %v375 = vpop.permute.xlu0 %374
  %v381 = vunpack.c.l.b16 %v349
  %v382 = vunpack.c.l.b16 %v350
  %v383 = vunpack.c.l.b16 %v351
  %v384 = vunpack.c.l.b16 %v352
  %v385 = vpack.c.b16 %v382, %v381
  %v386 = vpack.c.b16 %v384, %v383
  %v388 = vsel %vm188, %v385, 0
  %v391 = vsel %vm188, %v386, 0
  %393 = vmatprep.subr.bf16.mxu0 0
  %394 = vmatpush1.bf16.msra.mxu0 %v347
  %395 = vmatprep.subr.bf16.mxu0 0
  %396 = vmatpush1.bf16.msra.mxu0 %v348
  %397 = vmatprep.subr.bf16.mxu0 0
  %398 = vmatpush1.bf16.msra.mxu0 0
  %399 = vmatprep.subr.bf16.mxu0 0
  %400 = vmatpush1.bf16.msra.mxu0 0
  %401 = vmatprep.subr.bf16.mxu0 0
  %402 = vmatpush1.bf16.msra.mxu0 0
  %403 = vmatprep.subr.bf16.mxu0 0
  %404 = vmatpush1.bf16.msra.mxu0 0
  %405 = vmatprep.subr.bf16.mxu0 0
  %406 = vmatpush1.bf16.msra.mxu0 0
  %407 = vmatprep.subr.bf16.mxu0 0
  %408 = vmatpush1.bf16.msra.mxu0 0
  %409 = vmatprep.subr.bf16.mxu0 0
  %410 = vmatpush1.bf16.msra.mxu0 0
  %411 = vmatprep.subr.bf16.mxu0 0
  %412 = vmatpush1.bf16.msra.mxu0 0
  %413 = vmatprep.subr.bf16.mxu0 0
  %414 = vmatpush1.bf16.msra.mxu0 0
  %415 = vmatprep.subr.bf16.mxu0 0
  %416 = vmatpush1.bf16.msra.mxu0 0
  %417 = vmatprep.subr.bf16.mxu0 0
  %418 = vmatpush1.bf16.msra.mxu0 0
  %419 = vmatprep.subr.bf16.mxu0 0
  %420 = vmatpush1.bf16.msra.mxu0 0
  %421 = vmatprep.subr.bf16.mxu0 0
  %422 = vmatpush1.bf16.msra.mxu0 0
  %423 = vmatprep.subr.bf16.mxu0 0
  %424 = vmatpush1.bf16.msra.mxu0 0
  %425 = vmatprep.mubr.bf16.mxu0 0
  %426 = vmatmul.mubr.bf16.gmra.mrb[0].mxu0 %v388
  %v427 = vpop.f32.mrb[0].mxu0
  %v428 = vadd.f32 %v360, %v427
  %v429 = vpop.f32.mrb[0].mxu0
  %v430 = vpop.f32.mrb[0].mxu0
  %v431 = vadd.f32 %v365, %v430
  %v432 = vpop.f32.mrb[0].mxu0
  %433 = vmatprep.mubr.bf16.mxu0 0
  %434 = vmatmul.mubr.bf16.gmra.mrb[0].mxu0 %v391
  %v435 = vpop.f32.mrb[0].mxu0
  %v436 = vadd.f32 %v370, %v435
  %v437 = vpop.f32.mrb[0].mxu0
  %v438 = vpop.f32.mrb[0].mxu0
  %v439 = vadd.f32 %v375, %v438
  %v440 = vpop.f32.mrb[0].mxu0
  %441 = vdwg.mxu0
  %v442 = vtanh.pop %v428
  %v443 = vtanh.pop %v431
  %v444 = vtanh.pop %v436
  %v445 = vtanh.pop %v439
  %v446 = vpack.c.bf16 %v443, %v442
  %v447 = vpack.c.bf16 %v445, %v444
  %v448 = vld [vmem:[%s9] sm:$0xf]
  %v449 = vld [vmem:[%s9 + $0x4] sm:$0xf]
  %v450 = vld [vmem:[%s9 + $0x8] sm:$0xf]
  %v451 = vld [vmem:[%s9 + $0xc] sm:$0xf]
  %v452 = vld [vmem:[%s10] sm:$0xff]
  %v453 = vld [vmem:[%s10 + $0x8] sm:$0xff]
  %v454 = vld [vmem:[%s10 + $0x10] sm:$0xff]
  %v455 = vld [vmem:[%s10 + $0x18] sm:$0xff]
  %457 = vset.pattern.permute.xlu0 0
  %458 = vperm.xlu0 %457, %v452
  %v459 = vpop.permute.xlu0 %458
  %462 = vset.pattern.permute.xlu0 0
  %463 = vperm.xlu0 %462, %v453
  %v464 = vpop.permute.xlu0 %463
  %467 = vset.pattern.permute.xlu0 0
  %468 = vperm.xlu0 %467, %v454
  %v469 = vpop.permute.xlu0 %468
  %472 = vset.pattern.permute.xlu0 0
  %473 = vperm.xlu0 %472, %v455
  %v474 = vpop.permute.xlu0 %473
  %v480 = vunpack.c.l.b16 %v448
  %v481 = vunpack.c.l.b16 %v449
  %v482 = vunpack.c.l.b16 %v450
  %v483 = vunpack.c.l.b16 %v451
  %v484 = vpack.c.b16 %v481, %v480
  %v485 = vpack.c.b16 %v483, %v482
  %v487 = vsel %vm188, %v484, 0
  %v490 = vsel %vm188, %v485, 0
  %492 = vmatprep.subr.bf16.mxu0 0
  %493 = vmatpush1.bf16.msra.mxu0 %v446
  %494 = vmatprep.subr.bf16.mxu0 0
  %495 = vmatpush1.bf16.msra.mxu0 %v447
  %496 = vmatprep.subr.bf16.mxu0 0
  %497 = vmatpush1.bf16.msra.mxu0 0
  %498 = vmatprep.subr.bf16.mxu0 0
  %499 = vmatpush1.bf16.msra.mxu0 0
  %500 = vmatprep.subr.bf16.mxu0 0
  %501 = vmatpush1.bf16.msra.mxu0 0
  %502 = vmatprep.subr.bf16.mxu0 0
  %503 = vmatpush1.bf16.msra.mxu0 0
  %504 = vmatprep.subr.bf16.mxu0 0
  %505 = vmatpush1.bf16.msra.mxu0 0
  %506 = vmatprep.subr.bf16.mxu0 0
  %507 = vmatpush1.bf16.msra.mxu0 0
  %508 = vmatprep.subr.bf16.mxu0 0
  %509 = vmatpush1.bf16.msra.mxu0 0
  %510 = vmatprep.subr.bf16.mxu0 0
  %511 = vmatpush1.bf16.msra.mxu0 0
  %512 = vmatprep.subr.bf16.mxu0 0
  %513 = vmatpush1.bf16.msra.mxu0 0
  %514 = vmatprep.subr.bf16.mxu0 0
  %515 = vmatpush1.bf16.msra.mxu0 0
  %516 = vmatprep.subr.bf16.mxu0 0
  %517 = vmatpush1.bf16.msra.mxu0 0
  %518 = vmatprep.subr.bf16.mxu0 0
  %519 = vmatpush1.bf16.msra.mxu0 0
  %520 = vmatprep.subr.bf16.mxu0 0
  %521 = vmatpush1.bf16.msra.mxu0 0
  %522 = vmatprep.subr.bf16.mxu0 0
  %523 = vmatpush1.bf16.msra.mxu0 0
  %524 = vmatprep.mubr.bf16.mxu0 0
  %525 = vmatmul.mubr.bf16.gmra.mrb[0].mxu0 %v487
  %v526 = vpop.f32.mrb[0].mxu0
  %v527 = vadd.f32 %v459, %v526
  %v528 = vpop.f32.mrb[0].mxu0
  %v529 = vpop.f32.mrb[0].mxu0
  %v530 = vadd.f32 %v464, %v529
  %v531 = vpop.f32.mrb[0].mxu0
  %532 = vmatprep.mubr.bf16.mxu0 0
  %533 = vmatmul.mubr.bf16.gmra.mrb[0].mxu0 %v490
  %v534 = vpop.f32.mrb[0].mxu0
  %v535 = vadd.f32 %v469, %v534
  %v536 = vpop.f32.mrb[0].mxu0
  %v537 = vpop.f32.mrb[0].mxu0
  %v538 = vadd.f32 %v474, %v537
  %v539 = vpop.f32.mrb[0].mxu0
  %540 = vdwg.mxu0
  %v541 = vtanh.pop %v527
  %v542 = vtanh.pop %v530
  %v543 = vtanh.pop %v535
  %v544 = vtanh.pop %v538
  %v545 = vpack.c.bf16 %v542, %v541
  %v546 = vpack.c.bf16 %v544, %v543
  %v547 = vld [vmem:[%s11] sm:$0xf]
  %v548 = vld [vmem:[%s12] sm:$0xff]
  %550 = vset.pattern.permute.xlu0 0
  %551 = vperm.xlu0 %550, %v548
  %v552 = vpop.permute.xlu0 %551
  %v555 = vsel %vm188, %v547, 0
  %557 = vmatprep.subr.bf16.mxu0 0
  %558 = vmatpush1.bf16.msra.mxu0 %v545
  %559 = vmatprep.subr.bf16.mxu0 0
  %560 = vmatpush1.bf16.msra.mxu0 %v546
  %561 = vmatprep.subr.bf16.mxu0 0
  %562 = vmatpush1.bf16.msra.mxu0 0
  %563 = vmatprep.subr.bf16.mxu0 0
  %564 = vmatpush1.bf16.msra.mxu0 0
  %565 = vmatprep.subr.bf16.mxu0 0
  %566 = vmatpush1.bf16.msra.mxu0 0
  %567 = vmatprep.subr.bf16.mxu0 0
  %568 = vmatpush1.bf16.msra.mxu0 0
  %569 = vmatprep.subr.bf16.mxu0 0
  %570 = vmatpush1.bf16.msra.mxu0 0
  %571 = vmatprep.subr.bf16.mxu0 0
  %572 = vmatpush1.bf16.msra.mxu0 0
  %573 = vmatprep.subr.bf16.mxu0 0
  %574 = vmatpush1.bf16.msra.mxu0 0
  %575 = vmatprep.subr.bf16.mxu0 0
  %576 = vmatpush1.bf16.msra.mxu0 0
  %577 = vmatprep.subr.bf16.mxu0 0
  %578 = vmatpush1.bf16.msra.mxu0 0
  %579 = vmatprep.subr.bf16.mxu0 0
  %580 = vmatpush1.bf16.msra.mxu0 0
  %581 = vmatprep.subr.bf16.mxu0 0
  %582 = vmatpush1.bf16.msra.mxu0 0
  %583 = vmatprep.subr.bf16.mxu0 0
  %584 = vmatpush1.bf16.msra.mxu0 0
  %585 = vmatprep.subr.bf16.mxu0 0
  %586 = vmatpush1.bf16.msra.mxu0 0
  %587 = vmatprep.subr.bf16.mxu0 0
  %588 = vmatpush1.bf16.msra.mxu0 0
  %589 = vmatprep.mubr.bf16.mxu0 0
  %590 = vmatmul.mubr.bf16.gmra.mrb[0].mxu0 %v555
  %v591 = vpop.f32.mrb[0].mxu0
  %v592 = vadd.f32 %v552, %v591
  %v593 = vpop.f32.mrb[0].mxu0
  %v594 = vpop.f32.mrb[0].mxu0
  %v595 = vpop.f32.mrb[0].mxu0
  %596 = vdwg.mxu0
  %597 = vst [vmem:[%s13] sm:$0xff] %v592
  // Predicated region
  $region54: #{_qnetwork_forward_impl.1} parent=0 // pred_check
    _
  $region55: #{_qnetwork_forward_impl.1} parent=0 // pred_check_branch
    %599 = sbr.rel (0) target = $region57
  $region56: #{_qnetwork_forward_impl.1} parent=0 // pred_region
    _
  $region57: #{_qnetwork_forward_impl.1} parent=0 // pred_fallthru
    _
  // Predicated region
  $region58: #{_qnetwork_forward_impl.1} parent=0 // pred_check
    _
  $region59: #{_qnetwork_forward_impl.1} parent=0 // pred_check_branch
    %601 = sbr.rel (0) target = $region61
  $region60: #{_qnetwork_forward_impl.1} parent=0 // pred_region
    _
  $region61: #{_qnetwork_forward_impl.1} parent=0 // pred_fallthru
    _

</llo_original>
